<compile_context>
chip_gen: v7x
topology: tpu7x:2x2x1
jax: 0.10.0
libtpu: 0.0.40
codegen_flags: <defaults>
</compile_context>

<pallas_src>
import functools
import math

import jax
import jax.numpy as jnp
from jax.experimental import pallas as pl
from jax.experimental.pallas import tpu as pltpu


def _make_gate_kernel(rows, activation):
    """Build the fused-gate kernel body (rows and activation are static)."""
    if isinstance(activation, str):
        act = {"sigmoid": jax.nn.sigmoid, "tanh": jnp.tanh}[activation]
    else:
        act = activation  # any jnp-compatible elementwise callable

    def kernel(wu_ref, x_ref, h_ref, b_ref, out_ref, xh_ref):
        # Stack [x ; hidden] into one VMEM buffer -> a single K = 2*rows MXU pass.
        xh_ref[:rows, :] = x_ref[...]
        xh_ref[rows:, :] = h_ref[...]
        # (G*rows, 2*rows) @ (2*rows, col_tile) on the MXU, f32 accumulation.
        pre = jnp.dot(wu_ref[...], xh_ref[...],
                      preferred_element_type=jnp.float32)
        pre = pre + b_ref[...]                           # bias add in f32
        out_ref[...] = act(pre).astype(out_ref.dtype)    # EUP sigmoid/tanh in f32

    return kernel


def _pick_col_tile(cols, max_tile=512):
    """Largest lane-dense (multiple-of-128) tile dividing cols, capped at max_tile."""
    if cols <= max_tile:
        return cols
    for t in range(max_tile, 127, -128):
        if cols % t == 0:
            return t
    return cols  # ragged cols: fall back to one full-width tile


def mat_gru_gates_fused(Ws, Us, biases, x, hidden, *,
                        activation="sigmoid", use_bf16=True):
    """Evaluate G matrix-GRU gates sharing (x, hidden) in ONE pallas_call.

    Returns a tuple of G arrays: activation(W_g @ x + U_g @ hidden + bias_g).
    """
    rows, cols = x.shape
    G = len(Ws)
    assert len(Us) == G and len(biases) == G
    for W, U, b in zip(Ws, Us, biases):
        assert W.shape == (rows, rows)
        assert U.shape == (rows, rows)
        assert b.shape == (rows, cols)
    assert hidden.shape == (rows, cols)

    mm_dtype = jnp.bfloat16 if use_bf16 else x.dtype

    # [W_g | U_g] blocks stacked vertically -> (G*rows, 2*rows).
    # In a real model this concat depends only on parameters and is hoisted /
    # done once per parameter set; under jit it is a cheap one-time XLA op.
    WU = jnp.concatenate(
        [jnp.concatenate([W, U], axis=1) for W, U in zip(Ws, Us)], axis=0
    ).astype(mm_dtype)
    B = jnp.concatenate(list(biases), axis=0).astype(jnp.float32)
    xc = x.astype(mm_dtype)
    hc = hidden.astype(mm_dtype)

    col_tile = _pick_col_tile(cols)
    num_tiles = cols // col_tile

    kernel = _make_gate_kernel(rows, activation)

    out = pl.pallas_call(
        kernel,
        out_shape=jax.ShapeDtypeStruct((G * rows, cols), x.dtype),
        grid=(num_tiles,),
        in_specs=[
            # fused weights: constant index_map -> VMEM-resident across the grid
            pl.BlockSpec((G * rows, 2 * rows), lambda j: (0, 0)),
            pl.BlockSpec((rows, col_tile), lambda j: (0, j)),       # x tile
            pl.BlockSpec((rows, col_tile), lambda j: (0, j)),       # hidden tile
            pl.BlockSpec((G * rows, col_tile), lambda j: (0, j)),   # bias tile
        ],
        out_specs=pl.BlockSpec((G * rows, col_tile), lambda j: (0, j)),
        scratch_shapes=[pltpu.VMEM((2 * rows, col_tile), mm_dtype)],
        compiler_params=pltpu.CompilerParams(
            dimension_semantics=("parallel",)),
    )(WU, xc, hc, B)

    return tuple(out[g * rows:(g + 1) * rows, :] for g in range(G))


def mat_gru_gate(W, U, bias, x, hidden, *, activation="sigmoid", use_bf16=True):
    """out = activation(W @ x + U @ hidden + bias)  — the original module."""
    return mat_gru_gates_fused([W], [U], [bias], x, hidden,
                               activation=activation, use_bf16=use_bf16)[0]


# ----------------------------- references ---------------------------------

def _reference_f32(W, U, bias, x, hidden):
    return jax.nn.sigmoid(W @ x + U @ hidden + bias)


def _reference_bf16(W, U, bias, x, hidden):
    # Same bf16-input / f32-accumulate arithmetic as the kernel's MXU path.
    f = lambda a: a.astype(jnp.bfloat16).astype(jnp.float32)
    return jax.nn.sigmoid(f(W) @ f(x) + f(U) @ f(hidden) + bias)


if __name__ == "__main__":
    rows, cols = 32, 128   # small, but lane-dense (cols = 128 -> full vreg lanes)

    key = jax.random.PRNGKey(0)
    k_w, k_u, k_x, k_h = jax.random.split(key, 4)

    # reset_param: uniform(-stdv, stdv) with stdv = 1/sqrt(rows); bias = zeros.
    stdv = 1.0 / math.sqrt(rows)
    W = jax.random.uniform(k_w, (rows, rows), jnp.float32, -stdv, stdv)
    U = jax.random.uniform(k_u, (rows, rows), jnp.float32, -stdv, stdv)
    bias = jnp.zeros((rows, cols), jnp.float32)

    x = jax.random.normal(k_x, (rows, cols), jnp.float32)
    hidden = jax.random.normal(k_h, (rows, cols), jnp.float32)

    # --- single gate (matches the PyTorch module semantics) ----------------
    gate = jax.jit(functools.partial(mat_gru_gate,
                                     activation="sigmoid", use_bf16=True))
    out = jax.block_until_ready(gate(W, U, bias, x, hidden))
    assert out.shape == (rows, cols)
    assert jnp.allclose(out, _reference_bf16(W, U, bias, x, hidden),
                        atol=1e-3, rtol=1e-3), "mismatch vs bf16-matched reference"
    assert jnp.allclose(out, _reference_f32(W, U, bias, x, hidden),
                        atol=5e-2, rtol=5e-2), "mismatch vs f32 module reference"

    # --- fused: 3 gates sharing (x, hidden) in one pallas_call --------------
    k_gates = jax.random.split(jax.random.PRNGKey(1), 6)
    Ws = [jax.random.uniform(k, (rows, rows), jnp.float32, -stdv, stdv)
          for k in k_gates[:3]]
    Us = [jax.random.uniform(k, (rows, rows), jnp.float32, -stdv, stdv)
          for k in k_gates[3:]]
    Bs = [jnp.zeros((rows, cols), jnp.float32) for _ in range(3)]

    fused = jax.jit(functools.partial(mat_gru_gates_fused,
                                      activation="sigmoid", use_bf16=True))
    outs = jax.block_until_ready(fused(Ws, Us, Bs, x, hidden))
    assert len(outs) == 3
    for o, Wg, Ug, Bg in zip(outs, Ws, Us, Bs):
        assert o.shape == (rows, cols)
        assert jnp.allclose(o, _reference_bf16(Wg, Ug, Bg, x, hidden),
                            atol=1e-3, rtol=1e-3), "fused gate mismatch (bf16 ref)"
        assert jnp.allclose(o, _reference_f32(Wg, Ug, Bg, x, hidden),
                            atol=5e-2, rtol=5e-2), "fused gate mismatch (f32 ref)"

    print("KERNEL_OK")
</pallas_src>

<mosaic_0001>
module attributes {stable_mosaic.version = 11 : i64} {
  func.func @kernel(%arg0: i32, %arg1: memref<32x64xbf16, #tpu.memory_space<vmem>>, %arg2: memref<32x128xbf16, #tpu.memory_space<vmem>>, %arg3: memref<32x128xbf16, #tpu.memory_space<vmem>>, %arg4: memref<32x128xf32, #tpu.memory_space<vmem>>, %arg5: memref<32x128xf32, #tpu.memory_space<vmem>>, %arg6: memref<64x128xbf16, #tpu.memory_space<vmem>>) attributes {dimension_semantics = [#tpu.dimension_semantics<parallel>], iteration_bounds = array<i64: 1>, scalar_prefetch = 0 : i64, scratch_operands = 1 : i64, tpu.core_type = #tpu.core_type<tc>, window_params = [{pipeline_mode = #tpu.pipeline_mode<synchronous>, transform_indices = @transform_0, window_bounds = array<i64: 32, 64>}, {transform_indices = @transform_1, window_bounds = array<i64: 32, 128>}, {transform_indices = @transform_2, window_bounds = array<i64: 32, 128>}, {transform_indices = @transform_3, window_bounds = array<i64: 32, 128>}, {transform_indices = @transform_4, window_bounds = array<i64: 32, 128>}]} {
    %c0 = arith.constant 0 : index
    %c0_0 = arith.constant 0 : index
    %0 = vector.load %arg2[%c0, %c0_0] : memref<32x128xbf16, #tpu.memory_space<vmem>>, vector<32x128xbf16>
    %c0_1 = arith.constant 0 : index
    %c0_2 = arith.constant 0 : index
    %1 = vector.load %arg6[%c0_1, %c0_2] : memref<64x128xbf16, #tpu.memory_space<vmem>>, vector<32x128xbf16>
    tpu.vector_store %arg6[%c0_1, %c0_2], %0 {strides = array<i32>} : memref<64x128xbf16, #tpu.memory_space<vmem>>, vector<32x128xbf16>,
    %c0_3 = arith.constant 0 : index
    %c0_4 = arith.constant 0 : index
    %2 = vector.load %arg3[%c0_3, %c0_4] : memref<32x128xbf16, #tpu.memory_space<vmem>>, vector<32x128xbf16>
    %c32 = arith.constant 32 : index
    %c0_5 = arith.constant 0 : index
    %3 = vector.load %arg6[%c32, %c0_5] : memref<64x128xbf16, #tpu.memory_space<vmem>>, vector<32x128xbf16>
    tpu.vector_store %arg6[%c32, %c0_5], %2 {strides = array<i32>} : memref<64x128xbf16, #tpu.memory_space<vmem>>, vector<32x128xbf16>,
    %c0_6 = arith.constant 0 : index
    %c0_7 = arith.constant 0 : index
    %4 = vector.load %arg1[%c0_6, %c0_7] : memref<32x64xbf16, #tpu.memory_space<vmem>>, vector<32x64xbf16>
    %c0_8 = arith.constant 0 : index
    %c0_9 = arith.constant 0 : index
    %5 = vector.load %arg6[%c0_8, %c0_9] : memref<64x128xbf16, #tpu.memory_space<vmem>>, vector<64x128xbf16>
    %cst = arith.constant dense<0.000000e+00> : vector<32x128xf32>
    %6 = tpu.matmul %4, %5, %cst {dimension_numbers = #tpu.dot_dimension_numbers<[1], [0], [0], [1], [0, 0, 1, 1], [], []>} : vector<32x64xbf16>, vector<64x128xbf16>, vector<32x128xf32> -> vector<32x128xf32>
    %c0_10 = arith.constant 0 : index
    %c0_11 = arith.constant 0 : index
    %7 = vector.load %arg4[%c0_10, %c0_11] : memref<32x128xf32, #tpu.memory_space<vmem>>, vector<32x128xf32>
    %8 = arith.addf %6, %7 : vector<32x128xf32>
    %9 = arith.negf %8 : vector<32x128xf32>
    %10 = math.exp %9 : vector<32x128xf32>
    %cst_12 = arith.constant 1.000000e+00 : f32
    %11 = vector.broadcast %cst_12 : f32 to vector<32x128xf32>
    %12 = arith.addf %11, %10 : vector<32x128xf32>
    %13 = arith.divf %11, %12 : vector<32x128xf32>
    %c0_13 = arith.constant 0 : index
    %c0_14 = arith.constant 0 : index
    %14 = vector.load %arg5[%c0_13, %c0_14] : memref<32x128xf32, #tpu.memory_space<vmem>>, vector<32x128xf32>
    tpu.vector_store %arg5[%c0_13, %c0_14], %13 {strides = array<i32>} : memref<32x128xf32, #tpu.memory_space<vmem>>, vector<32x128xf32>,
    return
  }
  func.func @transform_0(%arg0: i32) -> (i32, i32) {
    %c0_i32 = arith.constant 0 : i32
    %c0_i32_0 = arith.constant 0 : i32
    %c0_i32_1 = arith.constant 0 : i32
    return %c0_i32, %c0_i32_0 : i32, i32
  }
  func.func @transform_1(%arg0: i32) -> (i32, i32) {
    %c0_i32 = arith.constant 0 : i32
    %c0_i32_0 = arith.constant 0 : i32
    return %c0_i32, %arg0 : i32, i32
  }
  func.func @transform_2(%arg0: i32) -> (i32, i32) {
    %c0_i32 = arith.constant 0 : i32
    %c0_i32_0 = arith.constant 0 : i32
    return %c0_i32, %arg0 : i32, i32
  }
  func.func @transform_3(%arg0: i32) -> (i32, i32) {
    %c0_i32 = arith.constant 0 : i32
    %c0_i32_0 = arith.constant 0 : i32
    return %c0_i32, %arg0 : i32, i32
  }
  func.func @transform_4(%arg0: i32) -> (i32, i32) {
    %c0_i32 = arith.constant 0 : i32
    %c0_i32_0 = arith.constant 0 : i32
    return %c0_i32, %arg0 : i32, i32
  }
}

</mosaic_0001>

<llo_original>
// kernel: mat_gru_gate.1
$region0: #{mat_gru_gate.1}
  #allocation0 [shape = 'u32[]', space=smem, size = 0x4, offset = 0x4, fixed_abs, tag = 'smem constant byte address 0x4 - core index']
  #allocation1 [shape = 'u32[144,128]{1,0:T(1,128)}', space=vmem, size = 0x12000, scoped, tag = 'internal scratch']
  #allocation2 [shape = 'bf16[64,128]{1,0:T(16,128)(2,1)}', space=vmem, size = 0x4000, scoped, tag = 'scratch operand']
  %s0 = inlined_call_operand.vmem [shape: bf16[32,64], index: 0, kind: input, shape index: {}]
  %s1 = inlined_call_operand.vmem [shape: bf16[32,128], index: 1, kind: input, shape index: {}]
  %s2 = inlined_call_operand.vmem [shape: bf16[32,128], index: 2, kind: input, shape index: {}]
  %s3 = inlined_call_operand.vmem [shape: f32[32,128], index: 3, kind: input, shape index: {}]
  %s4 = inlined_call_operand.hbm [shape: f32[32,128], index: 4, kind: output, shape index: {}]
  %s5 = sld [smem:[#allocation0]]
  $region26: #{mat_gru_gate.1} parent=0
    _
  %s7 = ssub.s32 1, %s5
  %s8 = scalar_select 0, %s7, %s5
  $region1: #{mat_gru_gate.1} parent=0
    #allocation3 [shape = 'u8[16384]{0}', space=vmem, size = 0x4000, scoped, tag = 'output window, operand 0, single buffered']
    #allocation4 [shape = 's32[1]{0}', space=sflag, size = 0x4, scoped, tag = 'scoped memory for mat_gru_gate.1']
    %9 = vsyncpa [#allocation4], 0
    // Predicated region
    $region2: #{mat_gru_gate.1} parent=1 // pred_check
      _
    $region3: #{mat_gru_gate.1} parent=1 // pred_check_branch
      %11 = sbr.rel (0) target = $region5
    $region4: #{mat_gru_gate.1} parent=1 // pred_region
      _
    $region5: #{mat_gru_gate.1} parent=1 // pred_fallthru
      _
    // Predicated region
    $region6: #{mat_gru_gate.1} parent=1 // pred_check
      _
    $region7: #{mat_gru_gate.1} parent=1 // pred_check_branch
      %13 = sbr.rel (0) target = $region9
    $region8: #{mat_gru_gate.1} parent=1 // pred_region
      _
    $region9: #{mat_gru_gate.1} parent=1 // pred_fallthru
      _
    // Predicated region
    $region10: #{mat_gru_gate.1} parent=1 // pred_check
      _
    $region11: #{mat_gru_gate.1} parent=1 // pred_check_branch
      %15 = sbr.rel (0) target = $region13
    $region12: #{mat_gru_gate.1} parent=1 // pred_region
      _
    $region13: #{mat_gru_gate.1} parent=1 // pred_fallthru
      _
    // Predicated region
    $region14: #{mat_gru_gate.1} parent=1 // pred_check
      _
    $region15: #{mat_gru_gate.1} parent=1 // pred_check_branch
      %17 = sbr.rel (0) target = $region17
    $region16: #{mat_gru_gate.1} parent=1 // pred_region
      _
    $region17: #{mat_gru_gate.1} parent=1 // pred_fallthru
      _
    %v19 = vld [vmem:[%s1] sm:$0xf]
    %v20 = vld [vmem:[%s1 + $0x4] sm:$0xf]
    %v21 = vld [vmem:[%s1 + $0x8] sm:$0xf]
    %v22 = vld [vmem:[%s1 + $0xc] sm:$0xf]
    %v27 = vunpack.c.l.b16 %v19
    %v28 = vunpack.c.l.b16 %v20
    %v29 = vunpack.c.l.b16 %v21
    %v30 = vunpack.c.l.b16 %v22
    %v31 = vpack.c.b16 %v28, %v27
    %v32 = vpack.c.b16 %v30, %v29
    %35 = vst [vmem:[#allocation2] sm:$0xff] %v31
    %36 = vst [vmem:[#allocation2 + $0x8] sm:$0xff] %v32
    %v37 = vld [vmem:[%s2] sm:$0xf]
    %v38 = vld [vmem:[%s2 + $0x4] sm:$0xf]
    %v39 = vld [vmem:[%s2 + $0x8] sm:$0xf]
    %v40 = vld [vmem:[%s2 + $0xc] sm:$0xf]
    %v45 = vunpack.c.l.b16 %v37
    %v46 = vunpack.c.l.b16 %v38
    %v47 = vunpack.c.l.b16 %v39
    %v48 = vunpack.c.l.b16 %v40
    %v49 = vpack.c.b16 %v46, %v45
    %v50 = vpack.c.b16 %v48, %v47
    %53 = vst [vmem:[#allocation2 + $0x10] sm:$0xff] %v49
    %54 = vst [vmem:[#allocation2 + $0x18] sm:$0xff] %v50
    %v55 = vld [vmem:[%s0] sm:$0xf]
    %v56 = vld [vmem:[%s0 + $0x4] sm:$0xf]
    %v57 = vld [vmem:[%s0 + $0x8] sm:$0xf]
    %v58 = vld [vmem:[%s0 + $0xc] sm:$0xf]
    %v59 = vld [vmem:[#allocation2] sm:$0xff]
    %v60 = vld [vmem:[#allocation2 + $0x8] sm:$0xff]
    %v61 = vld [vmem:[#allocation2 + $0x10] sm:$0xff]
    %v62 = vld [vmem:[#allocation2 + $0x18] sm:$0xff]
    %v63 = vld [vmem:[%s3] sm:$0xff]
    %v64 = vld [vmem:[%s3 + $0x8] sm:$0xff]
    %v65 = vld [vmem:[%s3 + $0x10] sm:$0xff]
    %v66 = vld [vmem:[%s3 + $0x18] sm:$0xff]
    %v71 = vunpack.c.l.b16 %v55
    %v72 = vunpack.c.l.b16 %v56
    %v73 = vunpack.c.l.b16 %v57
    %v74 = vunpack.c.l.b16 %v58
    %v75 = vpack.c.b16 %v72, %v71
    %v76 = vpack.c.b16 %v74, %v73
    %vm77 = vcmask 523264
    %v79 = vsel %vm77, %v75, 0
    %v82 = vsel %vm77, %v76, 0
    %84 = vmatprep.subr.bf16.mxu0 0
    %85 = vmatpush1.bf16.msra.mxu0 %v59
    %86 = vmatprep.subr.bf16.mxu0 0
    %87 = vmatpush1.bf16.msra.mxu0 %v60
    %88 = vmatprep.subr.bf16.mxu0 0
    %89 = vmatpush1.bf16.msra.mxu0 %v61
    %90 = vmatprep.subr.bf16.mxu0 0
    %91 = vmatpush1.bf16.msra.mxu0 %v62
    %92 = vmatprep.subr.bf16.mxu0 0
    %93 = vmatpush1.bf16.msra.mxu0 0
    %94 = vmatprep.subr.bf16.mxu0 0
    %95 = vmatpush1.bf16.msra.mxu0 0
    %96 = vmatprep.subr.bf16.mxu0 0
    %97 = vmatpush1.bf16.msra.mxu0 0
    %98 = vmatprep.subr.bf16.mxu0 0
    %99 = vmatpush1.bf16.msra.mxu0 0
    %100 = vmatprep.subr.bf16.mxu0 0
    %101 = vmatpush1.bf16.msra.mxu0 0
    %102 = vmatprep.subr.bf16.mxu0 0
    %103 = vmatpush1.bf16.msra.mxu0 0
    %104 = vmatprep.subr.bf16.mxu0 0
    %105 = vmatpush1.bf16.msra.mxu0 0
    %106 = vmatprep.subr.bf16.mxu0 0
    %107 = vmatpush1.bf16.msra.mxu0 0
    %108 = vmatprep.subr.bf16.mxu0 0
    %109 = vmatpush1.bf16.msra.mxu0 0
    %110 = vmatprep.subr.bf16.mxu0 0
    %111 = vmatpush1.bf16.msra.mxu0 0
    %112 = vmatprep.subr.bf16.mxu0 0
    %113 = vmatpush1.bf16.msra.mxu0 0
    %114 = vmatprep.subr.bf16.mxu0 0
    %115 = vmatpush1.bf16.msra.mxu0 0
    %116 = vmatprep.mubr.bf16.mxu0 0
    %117 = vmatmul.mubr.bf16.gmra.mrb[0].mxu0 %v79
    %v118 = vpop.f32.mrb[0].mxu0
    %v119 = vadd.f32 %v63, %v118
    %v120 = vpop.f32.mrb[0].mxu0
    %v121 = vpop.f32.mrb[0].mxu0
    %v122 = vadd.f32 %v64, %v121
    %v123 = vpop.f32.mrb[0].mxu0
    %124 = vmatprep.mubr.bf16.mxu0 0
    %125 = vmatmul.mubr.bf16.gmra.mrb[0].mxu0 %v82
    %v126 = vpop.f32.mrb[0].mxu0
    %v127 = vadd.f32 %v65, %v126
    %v128 = vpop.f32.mrb[0].mxu0
    %v129 = vpop.f32.mrb[0].mxu0
    %v130 = vadd.f32 %v66, %v129
    %v131 = vpop.f32.mrb[0].mxu0
    %132 = vdwg.mxu0
    %v133 = vxor.u32 %v119, 2147483648
    %v134 = vxor.u32 %v122, 2147483648
    %v135 = vxor.u32 %v127, 2147483648
    %v136 = vxor.u32 %v130, 2147483648
    %v137 = vmul.f32 %v133, 1.442695
    %v138 = vpow.pop %v137
    %v139 = vmul.f32 %v134, 1.442695
    %v140 = vpow.pop %v139
    %v141 = vmul.f32 %v135, 1.442695
    %v142 = vpow.pop %v141
    %v143 = vmul.f32 %v136, 1.442695
    %v144 = vpow.pop %v143
    %v145 = vadd.f32 %v138, 1.0
    %v146 = vadd.f32 %v140, 1.0
    %v147 = vadd.f32 %v142, 1.0
    %v148 = vadd.f32 %v144, 1.0
    %v149 = vrcp.pop %v145
    %v150 = vmul.f32 1.0, %v149
    %v151 = vrcp.pop %v146
    %v152 = vmul.f32 1.0, %v151
    %v153 = vrcp.pop %v147
    %v154 = vmul.f32 1.0, %v153
    %v155 = vrcp.pop %v148
    %v156 = vmul.f32 1.0, %v155
    %157 = vst [vmem:[#allocation3] sm:$0xff] %v150
    %158 = vst [vmem:[#allocation3 + $0x8] sm:$0xff] %v152
    %159 = vst [vmem:[#allocation3 + $0x10] sm:$0xff] %v154
    %160 = vst [vmem:[#allocation3 + $0x18] sm:$0xff] %v156
    // Predicated region
    $region18: #{mat_gru_gate.1} parent=1 // pred_check
      _
    $region19: #{mat_gru_gate.1} parent=1 // pred_check_branch
      %162 = sbr.rel (0) target = $region21
    $region20: #{mat_gru_gate.1} parent=1 // pred_region
      %s164 = ssub.s32 512, 512
      %165 = vsyncadd [#allocation4], %s164
      %s166 = sshll.u32 [#allocation3], 4
      %s167 = int_to_ptr.vmem [resolvable:$true] %s166
      %172 = dma.vmem_to_hbm [thread:$0]  %s167, 512, %s4, [#allocation4], 128, 128, 8
    $region21: #{mat_gru_gate.1} parent=1 // pred_fallthru
      _
    // Predicated region
    $region22: #{mat_gru_gate.1} parent=1 // pred_check
      _
    $region23: #{mat_gru_gate.1} parent=1 // pred_check_branch
      %174 = sbr.rel (0) target = $region25
    $region24: #{mat_gru_gate.1} parent=1 // pred_region
      %175 = dma.done [#allocation4], 512
    $region25: #{mat_gru_gate.1} parent=1 // pred_fallthru
      _
    %176 = vsyncpa [#allocation4], 1

</llo_original>
